<compile_context>
chip_gen: v5e
topology: v5e:2x2
jax: 0.10.0
libtpu: 0.0.40
codegen_flags: <defaults>
</compile_context>

<pallas_src>
import functools

import jax
import jax.numpy as jnp
import numpy as np
from jax.experimental import pallas as pl
from jax.experimental.pallas import tpu as pltpu

_BN_EPS = 1e-5
_LANE = 128


def aode_kernel(t_ref, x_ref,
                w1_ref, wt1_ref, g1_ref, be1_ref,
                w2_ref, wt2_ref, g2_ref, be2_ref,
                w3_ref, wt3_ref, g3_ref, be3_ref,
                out_ref, *, seq_len, valid_cols):
    t = t_ref[0]                                   # scalar time from SMEM
    C, NLp = x_ref.shape

    # Lane-index masks, built once and reused by all three layers.
    lane = jax.lax.broadcasted_iota(jnp.int32, (1, NLp), 1)
    pos = lane % seq_len                                           # position inside each sequence
    valid = (lane < valid_cols).astype(jnp.float32)                # real (unpadded) lanes
    first = (pos == 0).astype(jnp.float32) * valid                 # l == 0 columns
    last = (pos == (seq_len - 1)).astype(jnp.float32) * valid      # l == L-1 columns
    keep_prev = 1.0 - first     # lanes where x[l-1] exists (kills batch-boundary wraparound)
    keep_next = 1.0 - last      # lanes where x[l+1] exists
    inv_count = 1.0 / float(valid_cols)

    def layer(act, w_ref, wt_ref, g_ref, be_ref):
        # --- ConcatConv1d(k=3, pad=1) as one MXU matmul (im2col over taps) -------
        x_prev = jnp.roll(act, 1, axis=1) * keep_prev      # x[:, l-1], zero at l==0
        x_next = jnp.roll(act, -1, axis=1) * keep_next     # x[:, l+1], zero at l==L-1
        stacked = jnp.concatenate([x_prev, act, x_next], axis=0)          # (3C, NLp)
        y = jnp.dot(w_ref[...], stacked, preferred_element_type=jnp.float32)  # (C, NLp)

        # Conv bias + interior time-channel term are per-channel constants -> they
        # cancel exactly under batch-stat BN and are dropped.  Only the boundary
        # columns deviate from that constant (missing left / right time tap).
        wt = wt_ref[...]                                    # (C, 2): [w_t[:,0], w_t[:,2]]
        y = y - t * (wt[:, 0:1] * first + wt[:, 1:2] * last)

        # --- BatchNorm1d(track_running_stats=False), affine folded ---------------
        mean = jnp.sum(y * valid, axis=1, keepdims=True) * inv_count       # (C, 1)
        centered = y - mean
        var = jnp.sum((centered * centered) * valid, axis=1, keepdims=True) * inv_count
        scale = g_ref[...] * jax.lax.rsqrt(var + _BN_EPS)                   # (C, 1)
        return centered * scale + be_ref[...]

    a = layer(x_ref[...], w1_ref, wt1_ref, g1_ref, be1_ref)
    a = layer(a, w2_ref, wt2_ref, g2_ref, be2_ref)
    out_ref[...] = layer(a, w3_ref, wt3_ref, g3_ref, be3_ref)


def aodefunc_forward(t, x, params):
    """x: (N, C, L) float32 (PyTorch NCL). params: 3 x (w (C, C+1, 3), b (C,), gamma (C,), beta (C,)).
    The conv bias b is accepted for API parity but cancels under batch-stat BN, so it is
    not sent to the kernel (exact algebra, validated against the reference below)."""
    N, C, L = x.shape
    NL = N * L
    NLp = ((NL + _LANE - 1) // _LANE) * _LANE          # lane-dense padding

    x_flat = jnp.transpose(x, (1, 0, 2)).reshape(C, NL)            # (C, N*L)
    x_flat = jnp.pad(x_flat, ((0, 0), (0, NLp - NL)))
    t_arr = jnp.reshape(jnp.asarray(t, jnp.float32), (1,))

    flat = []
    for (w, _b, g, be) in params:                      # _b: conv bias, BN-cancelled
        w_x = w[:, 1:, :]                              # spatial-channel taps (C, C, 3)
        w_fused = jnp.concatenate([w_x[:, :, 0], w_x[:, :, 1], w_x[:, :, 2]], axis=1)  # (C, 3C)
        w_time = jnp.stack([w[:, 0, 0], w[:, 0, 2]], axis=1)       # (C, 2) boundary time taps
        flat += [w_fused, w_time, g.reshape(C, 1), be.reshape(C, 1)]

    # Advisory cost estimate and VMEM sizing for the compiler.
    flops = 3 * (2 * C * (3 * C) * NLp + 12 * C * NLp)
    bytes_accessed = 4 * (2 * C * NLp + 3 * (3 * C * C + 4 * C) + 1)
    live_bytes = 4 * (10 * C * NLp + 3 * (3 * C * C + 4 * C) + 4 * NLp)
    vmem_limit = int(min(max(64 * live_bytes, 16 * 2**20), 32 * 2**20))

    out_flat = pl.pallas_call(
        functools.partial(aode_kernel, seq_len=L, valid_cols=NL),
        out_shape=jax.ShapeDtypeStruct((C, NLp), jnp.float32),
        in_specs=[pl.BlockSpec(memory_space=pltpu.MemorySpace.SMEM)]          # t scalar
                 + [pl.BlockSpec(memory_space=pltpu.MemorySpace.VMEM)] * (1 + len(flat)),
        out_specs=pl.BlockSpec(memory_space=pltpu.MemorySpace.VMEM),
        compiler_params=pltpu.CompilerParams(vmem_limit_bytes=vmem_limit),
        cost_estimate=pl.CostEstimate(flops=flops, transcendentals=3 * C,
                                      bytes_accessed=bytes_accessed),
    )(t_arr, x_flat, *flat)

    out = out_flat[:, :NL].reshape(C, N, L)
    return jnp.transpose(out, (1, 0, 2))               # back to (N, C, L)


def reference_forward(t, x, params):
    """Pure-JAX reference mirroring the PyTorch module semantics exactly
    (full time channel, conv bias, batch-stat BatchNorm with eps=1e-5)."""
    act = x
    for (w, b, g, be) in params:
        N, C, L = act.shape
        tt = jnp.full((N, 1, L), t, dtype=act.dtype)
        ttx = jnp.concatenate([tt, act], axis=1)
        y = jax.lax.conv_general_dilated(
            ttx, w, window_strides=(1,), padding=((1, 1),),
            dimension_numbers=('NCH', 'OIH', 'NCH'))
        y = y + b[None, :, None]
        mean = jnp.mean(y, axis=(0, 2), keepdims=True)
        var = jnp.mean((y - mean) ** 2, axis=(0, 2), keepdims=True)
        y = (y - mean) / jnp.sqrt(var + _BN_EPS)
        act = y * g[None, :, None] + be[None, :, None]
    return act


def init_params(key, dim):
    """Conv1d default init (U(-k, k), k=1/sqrt(fan_in)).  PyTorch BN defaults are
    gamma=1, beta=0; we randomize them slightly so the folded-affine path is
    actually exercised by the correctness check."""
    params = []
    fan_in = (dim + 1) * 3
    bound = 1.0 / np.sqrt(fan_in)
    for _ in range(3):
        key, kw, kb, kg, kbe = jax.random.split(key, 5)
        w = jax.random.uniform(kw, (dim, dim + 1, 3), jnp.float32, -bound, bound)
        b = jax.random.uniform(kb, (dim,), jnp.float32, -bound, bound)
        g = 1.0 + 0.1 * jax.random.normal(kg, (dim,), jnp.float32)
        be = 0.1 * jax.random.normal(kbe, (dim,), jnp.float32)
        params.append((w, b, g, be))
    return params


if __name__ == "__main__":
    # Small shapes: batch=2, channels(dim)=4, length=16 (PyTorch NCL)
    N, C, L = 2, 4, 16
    key = jax.random.PRNGKey(0)
    kx, kp = jax.random.split(key)
    x = jax.random.normal(kx, (N, C, L), jnp.float32)
    t = jnp.float32(0.5)
    params = init_params(kp, C)

    out = aodefunc_forward(t, x, params)
    out = jax.block_until_ready(out)
    assert out.shape == (N, C, L)

    ref = reference_forward(t, x, params)
    np.testing.assert_allclose(np.asarray(out), np.asarray(ref), rtol=1e-4, atol=1e-4)

    print("KERNEL_OK")
</pallas_src>

<mosaic_0001>
module attributes {stable_mosaic.version = 11 : i64} {
  func.func @aode_kernel(%arg0: memref<1xf32, #tpu.memory_space<smem>>, %arg1: memref<4x128xf32, #tpu.memory_space<vmem>>, %arg2: memref<4x12xf32, #tpu.memory_space<vmem>>, %arg3: memref<4x2xf32, #tpu.memory_space<vmem>>, %arg4: memref<4x1xf32, #tpu.memory_space<vmem>>, %arg5: memref<4x1xf32, #tpu.memory_space<vmem>>, %arg6: memref<4x12xf32, #tpu.memory_space<vmem>>, %arg7: memref<4x2xf32, #tpu.memory_space<vmem>>, %arg8: memref<4x1xf32, #tpu.memory_space<vmem>>, %arg9: memref<4x1xf32, #tpu.memory_space<vmem>>, %arg10: memref<4x12xf32, #tpu.memory_space<vmem>>, %arg11: memref<4x2xf32, #tpu.memory_space<vmem>>, %arg12: memref<4x1xf32, #tpu.memory_space<vmem>>, %arg13: memref<4x1xf32, #tpu.memory_space<vmem>>, %arg14: memref<4x128xf32, #tpu.memory_space<vmem>>) attributes {dimension_semantics = [], scalar_prefetch = 0 : i64, scratch_operands = 0 : i64, tpu.core_type = #tpu.core_type<tc>} {
    %c0 = arith.constant 0 : index
    %0 = memref.load %arg0[%c0] : memref<1xf32, #tpu.memory_space<smem>>
    %1 = tpu.iota {dimensions = array<i32: 1>} : vector<1x128xi32>
    %c16_i32 = arith.constant 16 : i32
    %c0_i32 = arith.constant 0 : i32
    %2 = arith.cmpi eq, %c16_i32, %c0_i32 : i32
    %c1_i32 = arith.constant 1 : i32
    %3 = arith.select %2, %c1_i32, %c16_i32 : i32
    %4 = vector.broadcast %3 : i32 to vector<1x128xi32>
    %5 = arith.remsi %1, %4 : vector<1x128xi32>
    %c0_i32_0 = arith.constant 0 : i32
    %6 = vector.broadcast %c0_i32_0 : i32 to vector<1x128xi32>
    %7 = arith.cmpi ne, %5, %6 : vector<1x128xi32>
    %c0_i32_1 = arith.constant 0 : i32
    %8 = vector.broadcast %c0_i32_1 : i32 to vector<1x128xi32>
    %9 = arith.cmpi slt, %5, %8 : vector<1x128xi32>
    %c0_i32_2 = arith.constant 0 : i32
    %10 = arith.cmpi slt, %3, %c0_i32_2 : i32
    %11 = vector.broadcast %10 : i1 to vector<1x128xi1>
    %12 = vector.broadcast %11 : vector<1x128xi1> to vector<1x128xi1>
    %13 = arith.xori %9, %12 : vector<1x128xi1>
    %14 = arith.andi %13, %7 : vector<1x128xi1>
    %15 = vector.broadcast %3 : i32 to vector<1x128xi32>
    %16 = arith.addi %5, %15 : vector<1x128xi32>
    %17 = arith.select %14, %16, %5 : vector<1x128xi1>, vector<1x128xi32>
    %c32_i32 = arith.constant 32 : i32
    %18 = vector.broadcast %c32_i32 : i32 to vector<1x128xi32>
    %19 = arith.cmpi slt, %1, %18 : vector<1x128xi32>
    %20 = arith.extui %19 : vector<1x128xi1> to vector<1x128xi32>
    %21 = arith.sitofp %20 : vector<1x128xi32> to vector<1x128xf32>
    %c0_i32_3 = arith.constant 0 : i32
    %22 = vector.broadcast %c0_i32_3 : i32 to vector<1x128xi32>
    %23 = arith.cmpi eq, %17, %22 : vector<1x128xi32>
    %24 = arith.extui %23 : vector<1x128xi1> to vector<1x128xi32>
    %25 = arith.sitofp %24 : vector<1x128xi32> to vector<1x128xf32>
    %26 = arith.mulf %25, %21 : vector<1x128xf32>
    %c15_i32 = arith.constant 15 : i32
    %27 = vector.broadcast %c15_i32 : i32 to vector<1x128xi32>
    %28 = arith.cmpi eq, %17, %27 : vector<1x128xi32>
    %29 = arith.extui %28 : vector<1x128xi1> to vector<1x128xi32>
    %30 = arith.sitofp %29 : vector<1x128xi32> to vector<1x128xf32>
    %31 = arith.mulf %30, %21 : vector<1x128xf32>
    %cst = arith.constant 1.000000e+00 : f32
    %32 = vector.broadcast %cst : f32 to vector<1x128xf32>
    %33 = arith.subf %32, %26 : vector<1x128xf32>
    %cst_4 = arith.constant 1.000000e+00 : f32
    %34 = vector.broadcast %cst_4 : f32 to vector<1x128xf32>
    %35 = arith.subf %34, %31 : vector<1x128xf32>
    %c0_5 = arith.constant 0 : index
    %c0_6 = arith.constant 0 : index
    %36 = vector.load %arg1[%c0_5, %c0_6] : memref<4x128xf32, #tpu.memory_space<vmem>>, vector<4x128xf32>
    %37 = vector.extract_strided_slice %36 {offsets = [0, 127], sizes = [4, 1], strides = [1, 1]} : vector<4x128xf32> to vector<4x1xf32>
    %38 = vector.extract_strided_slice %36 {offsets = [0, 0], sizes = [4, 127], strides = [1, 1]} : vector<4x128xf32> to vector<4x127xf32>
    %39 = tpu.concatenate %37, %38 in 1 : vector<4x1xf32>, vector<4x127xf32> -> vector<4x128xf32>
    %40 = vector.broadcast %33 : vector<1x128xf32> to vector<4x128xf32>
    %41 = arith.mulf %39, %40 : vector<4x128xf32>
    %42 = vector.extract_strided_slice %36 {offsets = [0, 1], sizes = [4, 127], strides = [1, 1]} : vector<4x128xf32> to vector<4x127xf32>
    %43 = vector.extract_strided_slice %36 {offsets = [0, 0], sizes = [4, 1], strides = [1, 1]} : vector<4x128xf32> to vector<4x1xf32>
    %44 = tpu.concatenate %42, %43 in 1 : vector<4x127xf32>, vector<4x1xf32> -> vector<4x128xf32>
    %45 = vector.broadcast %35 : vector<1x128xf32> to vector<4x128xf32>
    %46 = arith.mulf %44, %45 : vector<4x128xf32>
    %47 = tpu.concatenate %41, %36, %46 in 0 : vector<4x128xf32>, vector<4x128xf32>, vector<4x128xf32> -> vector<12x128xf32>
    %c0_7 = arith.constant 0 : index
    %c0_8 = arith.constant 0 : index
    %48 = vector.load %arg2[%c0_7, %c0_8] : memref<4x12xf32, #tpu.memory_space<vmem>>, vector<4x12xf32>
    %cst_9 = arith.constant dense<0.000000e+00> : vector<4x128xf32>
    %49 = tpu.matmul %48, %47, %cst_9 {dimension_numbers = #tpu.dot_dimension_numbers<[1], [0], [0], [1], [0, 0, 1, 1], [], []>} : vector<4x12xf32>, vector<12x128xf32>, vector<4x128xf32> -> vector<4x128xf32>
    %c0_10 = arith.constant 0 : index
    %c0_11 = arith.constant 0 : index
    %50 = vector.load %arg3[%c0_10, %c0_11] : memref<4x2xf32, #tpu.memory_space<vmem>>, vector<4x2xf32>
    %51 = vector.extract_strided_slice %50 {offsets = [0, 0], sizes = [4, 1], strides = [1, 1]} : vector<4x2xf32> to vector<4x1xf32>
    %52 = vector.broadcast %51 : vector<4x1xf32> to vector<4x128xf32>
    %53 = vector.broadcast %26 : vector<1x128xf32> to vector<4x128xf32>
    %54 = arith.mulf %52, %53 : vector<4x128xf32>
    %55 = vector.extract_strided_slice %50 {offsets = [0, 1], sizes = [4, 1], strides = [1, 1]} : vector<4x2xf32> to vector<4x1xf32>
    %56 = vector.broadcast %55 : vector<4x1xf32> to vector<4x128xf32>
    %57 = vector.broadcast %31 : vector<1x128xf32> to vector<4x128xf32>
    %58 = arith.mulf %56, %57 : vector<4x128xf32>
    %59 = arith.addf %54, %58 : vector<4x128xf32>
    %60 = vector.broadcast %0 : f32 to vector<4x128xf32>
    %61 = arith.mulf %60, %59 : vector<4x128xf32>
    %62 = arith.subf %49, %61 : vector<4x128xf32>
    %63 = vector.broadcast %21 : vector<1x128xf32> to vector<4x128xf32>
    %64 = arith.mulf %62, %63 : vector<4x128xf32>
    %cst_12 = arith.constant dense<0.000000e+00> : vector<4xf32>
    %65 = vector.multi_reduction <add>, %64, %cst_12 [1] : vector<4x128xf32> to vector<4xf32>
    %66 = vector.shape_cast %65 : vector<4xf32> to vector<4x1xf32>
    %cst_13 = arith.constant 3.125000e-02 : f32
    %67 = vector.broadcast %cst_13 : f32 to vector<4x1xf32>
    %68 = arith.mulf %66, %67 : vector<4x1xf32>
    %69 = vector.broadcast %68 : vector<4x1xf32> to vector<4x128xf32>
    %70 = arith.subf %62, %69 : vector<4x128xf32>
    %71 = arith.mulf %70, %70 : vector<4x128xf32>
    %72 = vector.broadcast %21 : vector<1x128xf32> to vector<4x128xf32>
    %73 = arith.mulf %71, %72 : vector<4x128xf32>
    %cst_14 = arith.constant dense<0.000000e+00> : vector<4xf32>
    %74 = vector.multi_reduction <add>, %73, %cst_14 [1] : vector<4x128xf32> to vector<4xf32>
    %75 = vector.shape_cast %74 : vector<4xf32> to vector<4x1xf32>
    %cst_15 = arith.constant 3.125000e-02 : f32
    %76 = vector.broadcast %cst_15 : f32 to vector<4x1xf32>
    %77 = arith.mulf %75, %76 : vector<4x1xf32>
    %c0_16 = arith.constant 0 : index
    %c0_17 = arith.constant 0 : index
    %78 = vector.load %arg4[%c0_16, %c0_17] : memref<4x1xf32, #tpu.memory_space<vmem>>, vector<4x1xf32>
    %cst_18 = arith.constant 9.99999974E-6 : f32
    %79 = vector.broadcast %cst_18 : f32 to vector<4x1xf32>
    %80 = arith.addf %77, %79 : vector<4x1xf32>
    %81 = math.rsqrt %80 : vector<4x1xf32>
    %82 = arith.mulf %78, %81 : vector<4x1xf32>
    %83 = vector.broadcast %82 : vector<4x1xf32> to vector<4x128xf32>
    %84 = arith.mulf %70, %83 : vector<4x128xf32>
    %c0_19 = arith.constant 0 : index
    %c0_20 = arith.constant 0 : index
    %85 = vector.load %arg5[%c0_19, %c0_20] : memref<4x1xf32, #tpu.memory_space<vmem>>, vector<4x1xf32>
    %86 = vector.broadcast %85 : vector<4x1xf32> to vector<4x128xf32>
    %87 = arith.addf %84, %86 : vector<4x128xf32>
    %88 = vector.extract_strided_slice %87 {offsets = [0, 127], sizes = [4, 1], strides = [1, 1]} : vector<4x128xf32> to vector<4x1xf32>
    %89 = vector.extract_strided_slice %87 {offsets = [0, 0], sizes = [4, 127], strides = [1, 1]} : vector<4x128xf32> to vector<4x127xf32>
    %90 = tpu.concatenate %88, %89 in 1 : vector<4x1xf32>, vector<4x127xf32> -> vector<4x128xf32>
    %91 = vector.broadcast %33 : vector<1x128xf32> to vector<4x128xf32>
    %92 = arith.mulf %90, %91 : vector<4x128xf32>
    %93 = vector.extract_strided_slice %87 {offsets = [0, 1], sizes = [4, 127], strides = [1, 1]} : vector<4x128xf32> to vector<4x127xf32>
    %94 = vector.extract_strided_slice %87 {offsets = [0, 0], sizes = [4, 1], strides = [1, 1]} : vector<4x128xf32> to vector<4x1xf32>
    %95 = tpu.concatenate %93, %94 in 1 : vector<4x127xf32>, vector<4x1xf32> -> vector<4x128xf32>
    %96 = vector.broadcast %35 : vector<1x128xf32> to vector<4x128xf32>
    %97 = arith.mulf %95, %96 : vector<4x128xf32>
    %98 = tpu.concatenate %92, %87, %97 in 0 : vector<4x128xf32>, vector<4x128xf32>, vector<4x128xf32> -> vector<12x128xf32>
    %c0_21 = arith.constant 0 : index
    %c0_22 = arith.constant 0 : index
    %99 = vector.load %arg6[%c0_21, %c0_22] : memref<4x12xf32, #tpu.memory_space<vmem>>, vector<4x12xf32>
    %cst_23 = arith.constant dense<0.000000e+00> : vector<4x128xf32>
    %100 = tpu.matmul %99, %98, %cst_23 {dimension_numbers = #tpu.dot_dimension_numbers<[1], [0], [0], [1], [0, 0, 1, 1], [], []>} : vector<4x12xf32>, vector<12x128xf32>, vector<4x128xf32> -> vector<4x128xf32>
    %c0_24 = arith.constant 0 : index
    %c0_25 = arith.constant 0 : index
    %101 = vector.load %arg7[%c0_24, %c0_25] : memref<4x2xf32, #tpu.memory_space<vmem>>, vector<4x2xf32>
    %102 = vector.extract_strided_slice %101 {offsets = [0, 0], sizes = [4, 1], strides = [1, 1]} : vector<4x2xf32> to vector<4x1xf32>
    %103 = vector.broadcast %102 : vector<4x1xf32> to vector<4x128xf32>
    %104 = vector.broadcast %26 : vector<1x128xf32> to vector<4x128xf32>
    %105 = arith.mulf %103, %104 : vector<4x128xf32>
    %106 = vector.extract_strided_slice %101 {offsets = [0, 1], sizes = [4, 1], strides = [1, 1]} : vector<4x2xf32> to vector<4x1xf32>
    %107 = vector.broadcast %106 : vector<4x1xf32> to vector<4x128xf32>
    %108 = vector.broadcast %31 : vector<1x128xf32> to vector<4x128xf32>
    %109 = arith.mulf %107, %108 : vector<4x128xf32>
    %110 = arith.addf %105, %109 : vector<4x128xf32>
    %111 = vector.broadcast %0 : f32 to vector<4x128xf32>
    %112 = arith.mulf %111, %110 : vector<4x128xf32>
    %113 = arith.subf %100, %112 : vector<4x128xf32>
    %114 = vector.broadcast %21 : vector<1x128xf32> to vector<4x128xf32>
    %115 = arith.mulf %113, %114 : vector<4x128xf32>
    %cst_26 = arith.constant dense<0.000000e+00> : vector<4xf32>
    %116 = vector.multi_reduction <add>, %115, %cst_26 [1] : vector<4x128xf32> to vector<4xf32>
    %117 = vector.shape_cast %116 : vector<4xf32> to vector<4x1xf32>
    %cst_27 = arith.constant 3.125000e-02 : f32
    %118 = vector.broadcast %cst_27 : f32 to vector<4x1xf32>
    %119 = arith.mulf %117, %118 : vector<4x1xf32>
    %120 = vector.broadcast %119 : vector<4x1xf32> to vector<4x128xf32>
    %121 = arith.subf %113, %120 : vector<4x128xf32>
    %122 = arith.mulf %121, %121 : vector<4x128xf32>
    %123 = vector.broadcast %21 : vector<1x128xf32> to vector<4x128xf32>
    %124 = arith.mulf %122, %123 : vector<4x128xf32>
    %cst_28 = arith.constant dense<0.000000e+00> : vector<4xf32>
    %125 = vector.multi_reduction <add>, %124, %cst_28 [1] : vector<4x128xf32> to vector<4xf32>
    %126 = vector.shape_cast %125 : vector<4xf32> to vector<4x1xf32>
    %cst_29 = arith.constant 3.125000e-02 : f32
    %127 = vector.broadcast %cst_29 : f32 to vector<4x1xf32>
    %128 = arith.mulf %126, %127 : vector<4x1xf32>
    %c0_30 = arith.constant 0 : index
    %c0_31 = arith.constant 0 : index
    %129 = vector.load %arg8[%c0_30, %c0_31] : memref<4x1xf32, #tpu.memory_space<vmem>>, vector<4x1xf32>
    %cst_32 = arith.constant 9.99999974E-6 : f32
    %130 = vector.broadcast %cst_32 : f32 to vector<4x1xf32>
    %131 = arith.addf %128, %130 : vector<4x1xf32>
    %132 = math.rsqrt %131 : vector<4x1xf32>
    %133 = arith.mulf %129, %132 : vector<4x1xf32>
    %134 = vector.broadcast %133 : vector<4x1xf32> to vector<4x128xf32>
    %135 = arith.mulf %121, %134 : vector<4x128xf32>
    %c0_33 = arith.constant 0 : index
    %c0_34 = arith.constant 0 : index
    %136 = vector.load %arg9[%c0_33, %c0_34] : memref<4x1xf32, #tpu.memory_space<vmem>>, vector<4x1xf32>
    %137 = vector.broadcast %136 : vector<4x1xf32> to vector<4x128xf32>
    %138 = arith.addf %135, %137 : vector<4x128xf32>
    %139 = vector.extract_strided_slice %138 {offsets = [0, 127], sizes = [4, 1], strides = [1, 1]} : vector<4x128xf32> to vector<4x1xf32>
    %140 = vector.extract_strided_slice %138 {offsets = [0, 0], sizes = [4, 127], strides = [1, 1]} : vector<4x128xf32> to vector<4x127xf32>
    %141 = tpu.concatenate %139, %140 in 1 : vector<4x1xf32>, vector<4x127xf32> -> vector<4x128xf32>
    %142 = vector.broadcast %33 : vector<1x128xf32> to vector<4x128xf32>
    %143 = arith.mulf %141, %142 : vector<4x128xf32>
    %144 = vector.extract_strided_slice %138 {offsets = [0, 1], sizes = [4, 127], strides = [1, 1]} : vector<4x128xf32> to vector<4x127xf32>
    %145 = vector.extract_strided_slice %138 {offsets = [0, 0], sizes = [4, 1], strides = [1, 1]} : vector<4x128xf32> to vector<4x1xf32>
    %146 = tpu.concatenate %144, %145 in 1 : vector<4x127xf32>, vector<4x1xf32> -> vector<4x128xf32>
    %147 = vector.broadcast %35 : vector<1x128xf32> to vector<4x128xf32>
    %148 = arith.mulf %146, %147 : vector<4x128xf32>
    %149 = tpu.concatenate %143, %138, %148 in 0 : vector<4x128xf32>, vector<4x128xf32>, vector<4x128xf32> -> vector<12x128xf32>
    %c0_35 = arith.constant 0 : index
    %c0_36 = arith.constant 0 : index
    %150 = vector.load %arg10[%c0_35, %c0_36] : memref<4x12xf32, #tpu.memory_space<vmem>>, vector<4x12xf32>
    %cst_37 = arith.constant dense<0.000000e+00> : vector<4x128xf32>
    %151 = tpu.matmul %150, %149, %cst_37 {dimension_numbers = #tpu.dot_dimension_numbers<[1], [0], [0], [1], [0, 0, 1, 1], [], []>} : vector<4x12xf32>, vector<12x128xf32>, vector<4x128xf32> -> vector<4x128xf32>
    %c0_38 = arith.constant 0 : index
    %c0_39 = arith.constant 0 : index
    %152 = vector.load %arg11[%c0_38, %c0_39] : memref<4x2xf32, #tpu.memory_space<vmem>>, vector<4x2xf32>
    %153 = vector.extract_strided_slice %152 {offsets = [0, 0], sizes = [4, 1], strides = [1, 1]} : vector<4x2xf32> to vector<4x1xf32>
    %154 = vector.broadcast %153 : vector<4x1xf32> to vector<4x128xf32>
    %155 = vector.broadcast %26 : vector<1x128xf32> to vector<4x128xf32>
    %156 = arith.mulf %154, %155 : vector<4x128xf32>
    %157 = vector.extract_strided_slice %152 {offsets = [0, 1], sizes = [4, 1], strides = [1, 1]} : vector<4x2xf32> to vector<4x1xf32>
    %158 = vector.broadcast %157 : vector<4x1xf32> to vector<4x128xf32>
    %159 = vector.broadcast %31 : vector<1x128xf32> to vector<4x128xf32>
    %160 = arith.mulf %158, %159 : vector<4x128xf32>
    %161 = arith.addf %156, %160 : vector<4x128xf32>
    %162 = vector.broadcast %0 : f32 to vector<4x128xf32>
    %163 = arith.mulf %162, %161 : vector<4x128xf32>
    %164 = arith.subf %151, %163 : vector<4x128xf32>
    %165 = vector.broadcast %21 : vector<1x128xf32> to vector<4x128xf32>
    %166 = arith.mulf %164, %165 : vector<4x128xf32>
    %cst_40 = arith.constant dense<0.000000e+00> : vector<4xf32>
    %167 = vector.multi_reduction <add>, %166, %cst_40 [1] : vector<4x128xf32> to vector<4xf32>
    %168 = vector.shape_cast %167 : vector<4xf32> to vector<4x1xf32>
    %cst_41 = arith.constant 3.125000e-02 : f32
    %169 = vector.broadcast %cst_41 : f32 to vector<4x1xf32>
    %170 = arith.mulf %168, %169 : vector<4x1xf32>
    %171 = vector.broadcast %170 : vector<4x1xf32> to vector<4x128xf32>
    %172 = arith.subf %164, %171 : vector<4x128xf32>
    %173 = arith.mulf %172, %172 : vector<4x128xf32>
    %174 = vector.broadcast %21 : vector<1x128xf32> to vector<4x128xf32>
    %175 = arith.mulf %173, %174 : vector<4x128xf32>
    %cst_42 = arith.constant dense<0.000000e+00> : vector<4xf32>
    %176 = vector.multi_reduction <add>, %175, %cst_42 [1] : vector<4x128xf32> to vector<4xf32>
    %177 = vector.shape_cast %176 : vector<4xf32> to vector<4x1xf32>
    %cst_43 = arith.constant 3.125000e-02 : f32
    %178 = vector.broadcast %cst_43 : f32 to vector<4x1xf32>
    %179 = arith.mulf %177, %178 : vector<4x1xf32>
    %c0_44 = arith.constant 0 : index
    %c0_45 = arith.constant 0 : index
    %180 = vector.load %arg12[%c0_44, %c0_45] : memref<4x1xf32, #tpu.memory_space<vmem>>, vector<4x1xf32>
    %cst_46 = arith.constant 9.99999974E-6 : f32
    %181 = vector.broadcast %cst_46 : f32 to vector<4x1xf32>
    %182 = arith.addf %179, %181 : vector<4x1xf32>
    %183 = math.rsqrt %182 : vector<4x1xf32>
    %184 = arith.mulf %180, %183 : vector<4x1xf32>
    %185 = vector.broadcast %184 : vector<4x1xf32> to vector<4x128xf32>
    %186 = arith.mulf %172, %185 : vector<4x128xf32>
    %c0_47 = arith.constant 0 : index
    %c0_48 = arith.constant 0 : index
    %187 = vector.load %arg13[%c0_47, %c0_48] : memref<4x1xf32, #tpu.memory_space<vmem>>, vector<4x1xf32>
    %188 = vector.broadcast %187 : vector<4x1xf32> to vector<4x128xf32>
    %189 = arith.addf %186, %188 : vector<4x128xf32>
    %c0_49 = arith.constant 0 : index
    %c0_50 = arith.constant 0 : index
    %190 = vector.load %arg14[%c0_49, %c0_50] : memref<4x128xf32, #tpu.memory_space<vmem>>, vector<4x128xf32>
    tpu.vector_store %arg14[%c0_49, %c0_50], %189 {strides = array<i32>} : memref<4x128xf32, #tpu.memory_space<vmem>>, vector<4x128xf32>,
    return
  }
}

</mosaic_0001>

<llo_original>
// kernel: tpu_custom_call.1
$region0: #{tpu_custom_call.1}
  #allocation0 [shape = 'u32[]', space=smem, size = 0x4, offset = 0x4, fixed_abs, tag = 'smem constant byte address 0x4 - core index']
  #allocation1 [shape = 'u32[72,128]{1,0:T(1,128)}', space=vmem, size = 0x9000, scoped, tag = 'internal scratch']
  #allocation2 [shape = 'f32[1]{0:T(128)S(6)}', space=smem, size = 0x200, scoped, tag = 'scoped memory for tpu_custom_call.1']
  %s0 = inlined_call_operand.<no memory space> [shape: f32[1], index: 0, kind: input, shape index: {}]
  %s1 = inlined_call_operand.vmem [shape: f32[4,128], index: 1, kind: input, shape index: {}]
  %s2 = inlined_call_operand.vmem [shape: f32[4,12], index: 2, kind: input, shape index: {}]
  %s3 = inlined_call_operand.vmem [shape: f32[4,2], index: 3, kind: input, shape index: {}]
  %s4 = inlined_call_operand.vmem [shape: f32[4,1], index: 4, kind: input, shape index: {}]
  %s5 = inlined_call_operand.vmem [shape: f32[4,1], index: 5, kind: input, shape index: {}]
  %s6 = inlined_call_operand.vmem [shape: f32[4,12], index: 6, kind: input, shape index: {}]
  %s7 = inlined_call_operand.vmem [shape: f32[4,2], index: 7, kind: input, shape index: {}]
  %s8 = inlined_call_operand.vmem [shape: f32[4,1], index: 8, kind: input, shape index: {}]
  %s9 = inlined_call_operand.vmem [shape: f32[4,1], index: 9, kind: input, shape index: {}]
  %s10 = inlined_call_operand.vmem [shape: f32[4,12], index: 10, kind: input, shape index: {}]
  %s11 = inlined_call_operand.vmem [shape: f32[4,2], index: 11, kind: input, shape index: {}]
  %s12 = inlined_call_operand.vmem [shape: f32[4,1], index: 12, kind: input, shape index: {}]
  %s13 = inlined_call_operand.vmem [shape: f32[4,1], index: 13, kind: input, shape index: {}]
  %s14 = inlined_call_operand.hbm [shape: f32[4,128], index: 14, kind: output, shape index: {}]
  %s15 = sld [smem:[#allocation0]]
  $region66: #{tpu_custom_call.1} parent=0
    _
  %s17 = ssub.s32 1, %s15
  %s18 = scalar_select 0, %s17, %s15
  %19 = sst [smem:[#allocation2]] %s0
  $region1: #{tpu_custom_call.1} parent=0
    #allocation3 [shape = 'u8[2048]{0}', space=vmem, size = 0x800, scoped, tag = 'output window, operand 0, single buffered']
    #allocation4 [shape = 's32[1]{0}', space=sflag, size = 0x4, scoped, tag = 'scoped memory for tpu_custom_call.1']
    %20 = vsyncpa [#allocation4], 0
    // Predicated region
    $region2: #{tpu_custom_call.1} parent=1 // pred_check
      _
    $region3: #{tpu_custom_call.1} parent=1 // pred_check_branch
      %22 = sbr.rel (0) target = $region5
    $region4: #{tpu_custom_call.1} parent=1 // pred_region
      _
    $region5: #{tpu_custom_call.1} parent=1 // pred_fallthru
      _
    // Predicated region
    $region6: #{tpu_custom_call.1} parent=1 // pred_check
      _
    $region7: #{tpu_custom_call.1} parent=1 // pred_check_branch
      %24 = sbr.rel (0) target = $region9
    $region8: #{tpu_custom_call.1} parent=1 // pred_region
      _
    $region9: #{tpu_custom_call.1} parent=1 // pred_fallthru
      _
    // Predicated region
    $region10: #{tpu_custom_call.1} parent=1 // pred_check
      _
    $region11: #{tpu_custom_call.1} parent=1 // pred_check_branch
      %26 = sbr.rel (0) target = $region13
    $region12: #{tpu_custom_call.1} parent=1 // pred_region
      _
    $region13: #{tpu_custom_call.1} parent=1 // pred_fallthru
      _
    // Predicated region
    $region14: #{tpu_custom_call.1} parent=1 // pred_check
      _
    $region15: #{tpu_custom_call.1} parent=1 // pred_check_branch
      %28 = sbr.rel (0) target = $region17
    $region16: #{tpu_custom_call.1} parent=1 // pred_region
      _
    $region17: #{tpu_custom_call.1} parent=1 // pred_fallthru
      _
    // Predicated region
    $region18: #{tpu_custom_call.1} parent=1 // pred_check
      _
    $region19: #{tpu_custom_call.1} parent=1 // pred_check_branch
      %30 = sbr.rel (0) target = $region21
    $region20: #{tpu_custom_call.1} parent=1 // pred_region
      _
    $region21: #{tpu_custom_call.1} parent=1 // pred_fallthru
      _
    // Predicated region
    $region22: #{tpu_custom_call.1} parent=1 // pred_check
      _
    $region23: #{tpu_custom_call.1} parent=1 // pred_check_branch
      %32 = sbr.rel (0) target = $region25
    $region24: #{tpu_custom_call.1} parent=1 // pred_region
      _
    $region25: #{tpu_custom_call.1} parent=1 // pred_fallthru
      _
    // Predicated region
    $region26: #{tpu_custom_call.1} parent=1 // pred_check
      _
    $region27: #{tpu_custom_call.1} parent=1 // pred_check_branch
      %34 = sbr.rel (0) target = $region29
    $region28: #{tpu_custom_call.1} parent=1 // pred_region
      _
    $region29: #{tpu_custom_call.1} parent=1 // pred_fallthru
      _
    // Predicated region
    $region30: #{tpu_custom_call.1} parent=1 // pred_check
      _
    $region31: #{tpu_custom_call.1} parent=1 // pred_check_branch
      %36 = sbr.rel (0) target = $region33
    $region32: #{tpu_custom_call.1} parent=1 // pred_region
      _
    $region33: #{tpu_custom_call.1} parent=1 // pred_fallthru
      _
    // Predicated region
    $region34: #{tpu_custom_call.1} parent=1 // pred_check
      _
    $region35: #{tpu_custom_call.1} parent=1 // pred_check_branch
      %38 = sbr.rel (0) target = $region37
    $region36: #{tpu_custom_call.1} parent=1 // pred_region
      _
    $region37: #{tpu_custom_call.1} parent=1 // pred_fallthru
      _
    // Predicated region
    $region38: #{tpu_custom_call.1} parent=1 // pred_check
      _
    $region39: #{tpu_custom_call.1} parent=1 // pred_check_branch
      %40 = sbr.rel (0) target = $region41
    $region40: #{tpu_custom_call.1} parent=1 // pred_region
      _
    $region41: #{tpu_custom_call.1} parent=1 // pred_fallthru
      _
    // Predicated region
    $region42: #{tpu_custom_call.1} parent=1 // pred_check
      _
    $region43: #{tpu_custom_call.1} parent=1 // pred_check_branch
      %42 = sbr.rel (0) target = $region45
    $region44: #{tpu_custom_call.1} parent=1 // pred_region
      _
    $region45: #{tpu_custom_call.1} parent=1 // pred_fallthru
      _
    // Predicated region
    $region46: #{tpu_custom_call.1} parent=1 // pred_check
      _
    $region47: #{tpu_custom_call.1} parent=1 // pred_check_branch
      %44 = sbr.rel (0) target = $region49
    $region48: #{tpu_custom_call.1} parent=1 // pred_region
      _
    $region49: #{tpu_custom_call.1} parent=1 // pred_fallthru
      _
    // Predicated region
    $region50: #{tpu_custom_call.1} parent=1 // pred_check
      _
    $region51: #{tpu_custom_call.1} parent=1 // pred_check_branch
      %46 = sbr.rel (0) target = $region53
    $region52: #{tpu_custom_call.1} parent=1 // pred_region
      _
    $region53: #{tpu_custom_call.1} parent=1 // pred_fallthru
      _
    // Predicated region
    $region54: #{tpu_custom_call.1} parent=1 // pred_check
      _
    $region55: #{tpu_custom_call.1} parent=1 // pred_check_branch
      %48 = sbr.rel (0) target = $region57
    $region56: #{tpu_custom_call.1} parent=1 // pred_region
      _
    $region57: #{tpu_custom_call.1} parent=1 // pred_fallthru
      _
    %s49 = sld [smem:[#allocation2]]
    %v50 = vlaneseq
    %v51 = vand.u32 %v50, 127
    %vm52 = vcmp.lt.s32.totalorder %v51, 0
    %v53 = vsub.s32 0, %v51
    %v54 = vsel %vm52, %v53, %v51
    %v55 = vshrl.u32 %v54, 4
    %v56 = vand.u32 %v54, 15
    %v57 = vsub.s32 0, %v56
    %v58 = vsel %vm52, %v57, %v56
    %vm59 = vcmp.ne.s32.totalorder %v58, 0
    %vm60 = vcmp.lt.s32.totalorder %v58, 0
    %vm61 = vmand %vm60, %vm59
    %v62 = vadd.s32 %v58, 16
    %v63 = vsel %vm61, %v62, %v58
    %vm64 = vcmp.lt.s32.totalorder %v51, 32
    %v65 = vsel %vm64, 1, 0
    %v66 = vcvt.s32.f32 %v65
    %vm67 = vcmp.eq.s32.totalorder %v63, 0
    %v68 = vsel %vm67, 1, 0
    %v69 = vcvt.s32.f32 %v68
    %v70 = vmul.f32 %v69, %v66
    %vm71 = vcmp.eq.s32.totalorder %v63, 15
    %v72 = vsel %vm71, 1, 0
    %v73 = vcvt.s32.f32 %v72
    %v74 = vmul.f32 %v73, %v66
    %v75 = vsub.f32 1.0, %v70
    %v76 = vsub.f32 1.0, %v74
    %v77 = vld [vmem:[%s1] sm:$0xf]
    %79 = vrot.lane.b32.xlu0 %v77, 1
    %v80 = vpop.permute.xlu0 %79
    %v82 = vmul.f32 %v80, %v75
    %83 = vrot.lane.b32.xlu0 %v77, 127
    %v84 = vpop.permute.xlu0 %83
    %v86 = vmul.f32 %v84, %v76
    %v87 = vrot.slane %v77, 4
    %vm89 = vcmask 1043456
    %v90 = vsel %vm89, %v82, %v87
    %v91 = vld [vmem:[%s2] sm:$0xf]
    %vm92 = vcmask 97280
    %v94 = vsel %vm92, %v91, 0
    %v97 = vsel %vm89, %v86, 0
    %99 = vmatpush.msra.mxu0 0.0
    %100 = vmatpush.msra.mxu0 0.0
    %101 = vmatpush.msra.mxu0 0.0
    %102 = vmatpush.msra.mxu0 0.0
    %103 = vmatpush.msra.mxu0 0.0
    %104 = vmatpush.msra.mxu0 0.0
    %105 = vmatpush.msra.mxu0 0.0
    %106 = vmatpush.msra.mxu0 0.0
    %107 = vmatpush.msra.mxu0 0.0
    %108 = vmatpush.msra.mxu0 0.0
    %109 = vmatpush.msra.mxu0 0.0
    %110 = vmatpush.msra.mxu0 0.0
    %111 = vmatpush.msra.mxu0 0.0
    %112 = vmatpush.msra.mxu0 0.0
    %113 = vmatpush.msra.mxu0 %v97
    %114 = vmatpush.msra.mxu0 %v90
    %115 = vmatmul.f32.gmra.mxu0 %v94
    %v116 = vpop.f32.mrf.mxu0
    %v117 = vadd.f32 0.0, %v116
    %118 = vdwg.mxu0
    %v119 = vld [vmem:[%s3] sm:$0xf]
    %121 = vset.pattern.permute.xlu0 0
    %122 = vperm.xlu0 %121, %v119
    %v123 = vpop.permute.xlu0 %122
    %v125 = vmul.f32 %v123, %v70
    %126 = vset.pattern.permute.xlu0 1
    %127 = vperm.xlu0 %126, %v119
    %v128 = vpop.permute.xlu0 %127
    %v130 = vmul.f32 %v128, %v74
    %v131 = vadd.f32 %v125, %v130
    %v132 = vstv %s49
    %v133 = vmul.f32 %v132, %v131
    %v134 = vsub.f32 %v117, %v133
    %v135 = vmul.f32 %v134, %v66
    %v136 = vsel %vm89, %v135, 0.0
    %137 = vadd.xlane.f32.xlu0 %v136
    %v138 = vpop.xlane.xlu0 %137
    %v139 = vmul.f32 %v138, 0.03125
    %v140 = vsub.f32 %v134, %v139
    %v141 = vmul.f32 %v140, %v140
    %v142 = vmul.f32 %v141, %v66
    %v143 = vsel %vm89, %v142, 0.0
    %144 = vadd.xlane.f32.xlu0 %v143
    %v145 = vpop.xlane.xlu0 %144
    %v146 = vmul.f32 %v145, 0.03125
    %v147 = vld [vmem:[%s4] sm:$0xf]
    %v148 = vadd.f32 %v146, 1e-05
    %v149 = vrsqrt.pop %v148
    %v150 = vmul.f32 %v149, %v148
    %v151 = vmul.f32 %v150, %v149
    %v152 = vmul.f32 0.5, %v151
    %v153 = vsub.f32 1.5, %v152
    %v154 = vmul.f32 %v149, %v153
    %vm155 = vweird.f32 %v148
    %vm156 = vweird.f32 %v149
    %vm157 = vmor %vm155, %vm156
    %v158 = vsel %vm157, %v149, %v154
    %v159 = vmul.f32 %v147, %v158
    %161 = vset.pattern.permute.xlu0 0
    %162 = vperm.xlu0 %161, %v159
    %v163 = vpop.permute.xlu0 %162
    %v165 = vmul.f32 %v140, %v163
    %v166 = vld [vmem:[%s5] sm:$0xf]
    %168 = vset.pattern.permute.xlu0 0
    %169 = vperm.xlu0 %168, %v166
    %v170 = vpop.permute.xlu0 %169
    %v172 = vadd.f32 %v165, %v170
    %174 = vrot.lane.b32.xlu0 %v172, 1
    %v175 = vpop.permute.xlu0 %174
    %v177 = vmul.f32 %v175, %v75
    %178 = vrot.lane.b32.xlu0 %v172, 127
    %v179 = vpop.permute.xlu0 %178
    %v181 = vmul.f32 %v179, %v76
    %v182 = vrot.slane %v172, 4
    %v184 = vsel %vm89, %v177, %v182
    %v185 = vld [vmem:[%s6] sm:$0xf]
    %v187 = vsel %vm92, %v185, 0
    %v190 = vsel %vm89, %v181, 0
    %192 = vmatpush.msra.mxu0 0.0
    %193 = vmatpush.msra.mxu0 0.0
    %194 = vmatpush.msra.mxu0 0.0
    %195 = vmatpush.msra.mxu0 0.0
    %196 = vmatpush.msra.mxu0 0.0
    %197 = vmatpush.msra.mxu0 0.0
    %198 = vmatpush.msra.mxu0 0.0
    %199 = vmatpush.msra.mxu0 0.0
    %200 = vmatpush.msra.mxu0 0.0
    %201 = vmatpush.msra.mxu0 0.0
    %202 = vmatpush.msra.mxu0 0.0
    %203 = vmatpush.msra.mxu0 0.0
    %204 = vmatpush.msra.mxu0 0.0
    %205 = vmatpush.msra.mxu0 0.0
    %206 = vmatpush.msra.mxu0 %v190
    %207 = vmatpush.msra.mxu0 %v184
    %208 = vmatmul.f32.gmra.mxu0 %v187
    %v209 = vpop.f32.mrf.mxu0
    %v210 = vadd.f32 0.0, %v209
    %211 = vdwg.mxu0
    %v212 = vld [vmem:[%s7] sm:$0xf]
    %214 = vset.pattern.permute.xlu0 0
    %215 = vperm.xlu0 %214, %v212
    %v216 = vpop.permute.xlu0 %215
    %v218 = vmul.f32 %v216, %v70
    %219 = vset.pattern.permute.xlu0 1
    %220 = vperm.xlu0 %219, %v212
    %v221 = vpop.permute.xlu0 %220
    %v223 = vmul.f32 %v221, %v74
    %v224 = vadd.f32 %v218, %v223
    %v225 = vmul.f32 %v132, %v224
    %v226 = vsub.f32 %v210, %v225
    %v227 = vmul.f32 %v226, %v66
    %v228 = vsel %vm89, %v227, 0.0
    %229 = vadd.xlane.f32.xlu0 %v228
    %v230 = vpop.xlane.xlu0 %229
    %v231 = vmul.f32 %v230, 0.03125
    %v232 = vsub.f32 %v226, %v231
    %v233 = vmul.f32 %v232, %v232
    %v234 = vmul.f32 %v233, %v66
    %v235 = vsel %vm89, %v234, 0.0
    %236 = vadd.xlane.f32.xlu0 %v235
    %v237 = vpop.xlane.xlu0 %236
    %v238 = vmul.f32 %v237, 0.03125
    %v239 = vld [vmem:[%s8] sm:$0xf]
    %v240 = vadd.f32 %v238, 1e-05
    %v241 = vrsqrt.pop %v240
    %v242 = vmul.f32 %v241, %v240
    %v243 = vmul.f32 %v242, %v241
    %v244 = vmul.f32 0.5, %v243
    %v245 = vsub.f32 1.5, %v244
    %v246 = vmul.f32 %v241, %v245
    %vm247 = vweird.f32 %v240
    %vm248 = vweird.f32 %v241
    %vm249 = vmor %vm247, %vm248
    %v250 = vsel %vm249, %v241, %v246
    %v251 = vmul.f32 %v239, %v250
    %253 = vset.pattern.permute.xlu0 0
    %254 = vperm.xlu0 %253, %v251
    %v255 = vpop.permute.xlu0 %254
    %v257 = vmul.f32 %v232, %v255
    %v258 = vld [vmem:[%s9] sm:$0xf]
    %260 = vset.pattern.permute.xlu0 0
    %261 = vperm.xlu0 %260, %v258
    %v262 = vpop.permute.xlu0 %261
    %v264 = vadd.f32 %v257, %v262
    %266 = vrot.lane.b32.xlu0 %v264, 1
    %v267 = vpop.permute.xlu0 %266
    %v269 = vmul.f32 %v267, %v75
    %270 = vrot.lane.b32.xlu0 %v264, 127
    %v271 = vpop.permute.xlu0 %270
    %v273 = vmul.f32 %v271, %v76
    %v274 = vrot.slane %v264, 4
    %v276 = vsel %vm89, %v269, %v274
    %v277 = vld [vmem:[%s10] sm:$0xf]
    %v279 = vsel %vm92, %v277, 0
    %v282 = vsel %vm89, %v273, 0
    %284 = vmatpush.msra.mxu0 0.0
    %285 = vmatpush.msra.mxu0 0.0
    %286 = vmatpush.msra.mxu0 0.0
    %287 = vmatpush.msra.mxu0 0.0
    %288 = vmatpush.msra.mxu0 0.0
    %289 = vmatpush.msra.mxu0 0.0
    %290 = vmatpush.msra.mxu0 0.0
    %291 = vmatpush.msra.mxu0 0.0
    %292 = vmatpush.msra.mxu0 0.0
    %293 = vmatpush.msra.mxu0 0.0
    %294 = vmatpush.msra.mxu0 0.0
    %295 = vmatpush.msra.mxu0 0.0
    %296 = vmatpush.msra.mxu0 0.0
    %297 = vmatpush.msra.mxu0 0.0
    %298 = vmatpush.msra.mxu0 %v282
    %299 = vmatpush.msra.mxu0 %v276
    %300 = vmatmul.f32.gmra.mxu0 %v279
    %v301 = vpop.f32.mrf.mxu0
    %v302 = vadd.f32 0.0, %v301
    %303 = vdwg.mxu0
    %v304 = vld [vmem:[%s11] sm:$0xf]
    %306 = vset.pattern.permute.xlu0 0
    %307 = vperm.xlu0 %306, %v304
    %v308 = vpop.permute.xlu0 %307
    %v310 = vmul.f32 %v308, %v70
    %311 = vset.pattern.permute.xlu0 1
    %312 = vperm.xlu0 %311, %v304
    %v313 = vpop.permute.xlu0 %312
    %v315 = vmul.f32 %v313, %v74
    %v316 = vadd.f32 %v310, %v315
    %v317 = vmul.f32 %v132, %v316
    %v318 = vsub.f32 %v302, %v317
    %v319 = vmul.f32 %v318, %v66
    %v320 = vsel %vm89, %v319, 0.0
    %321 = vadd.xlane.f32.xlu0 %v320
    %v322 = vpop.xlane.xlu0 %321
    %v323 = vmul.f32 %v322, 0.03125
    %v324 = vsub.f32 %v318, %v323
    %v325 = vmul.f32 %v324, %v324
    %v326 = vmul.f32 %v325, %v66
    %v327 = vsel %vm89, %v326, 0.0
    %328 = vadd.xlane.f32.xlu0 %v327
    %v329 = vpop.xlane.xlu0 %328
    %v330 = vmul.f32 %v329, 0.03125
    %v331 = vld [vmem:[%s12] sm:$0xf]
    %v332 = vadd.f32 %v330, 1e-05
    %v333 = vrsqrt.pop %v332
    %v334 = vmul.f32 %v333, %v332
    %v335 = vmul.f32 %v334, %v333
    %v336 = vmul.f32 0.5, %v335
    %v337 = vsub.f32 1.5, %v336
    %v338 = vmul.f32 %v333, %v337
    %vm339 = vweird.f32 %v332
    %vm340 = vweird.f32 %v333
    %vm341 = vmor %vm339, %vm340
    %v342 = vsel %vm341, %v333, %v338
    %v343 = vmul.f32 %v331, %v342
    %345 = vset.pattern.permute.xlu0 0
    %346 = vperm.xlu0 %345, %v343
    %v347 = vpop.permute.xlu0 %346
    %v349 = vmul.f32 %v324, %v347
    %v350 = vld [vmem:[%s13] sm:$0xf]
    %352 = vset.pattern.permute.xlu0 0
    %353 = vperm.xlu0 %352, %v350
    %v354 = vpop.permute.xlu0 %353
    %v356 = vadd.f32 %v349, %v354
    %357 = vst [vmem:[#allocation3] sm:$0xf] %v356
    // Predicated region
    $region58: #{tpu_custom_call.1} parent=1 // pred_check
      _
    $region59: #{tpu_custom_call.1} parent=1 // pred_check_branch
      %359 = sbr.rel (0) target = $region61
    $region60: #{tpu_custom_call.1} parent=1 // pred_region
      %361 = vsyncadd [#allocation4], 0
      %s363 = sshll.u32 [#allocation3], 4
      %s364 = int_to_ptr.vmem [resolvable:$true] %s363
      %s365 = sshll.u32 %s14, 4
      %s366 = int_to_ptr.hbm [resolvable:$true] %s365
      %368 = dma.vmem_to_hbm [thread:$0]  %s364, 64, %s366, [#allocation4]
    $region61: #{tpu_custom_call.1} parent=1 // pred_fallthru
      _
    // Predicated region
    $region62: #{tpu_custom_call.1} parent=1 // pred_check
      _
    $region63: #{tpu_custom_call.1} parent=1 // pred_check_branch
      %370 = sbr.rel (0) target = $region65
    $region64: #{tpu_custom_call.1} parent=1 // pred_region
      %372 = dma.done [#allocation4], 64
    $region65: #{tpu_custom_call.1} parent=1 // pred_fallthru
      _
    %373 = vsyncpa [#allocation4], 1

</llo_original>
